<compile_context>
chip_gen: v6e
topology: v6e:2x2x1
jax: 0.10.0
libtpu: 0.0.40
codegen_flags: <defaults>
</compile_context>

<pallas_src>
import jax
import jax.numpy as jnp
from jax.experimental import pallas as pl
from jax.experimental.pallas import tpu as pltpu

MIN_LOGSTD = -20.0
MAX_LOGSTD = 2.0
_MIB = 1024 * 1024


def _round_up(x, m):
    return (x + m - 1) // m * m


def _vae_encoder_kernel(x_ref, a_ref, w1x_ref, w1a_ref, b1_ref,
                        w2_ref, b2_ref, wh_ref, bh_ref, m_ref, out_ref):
    # Hidden layer 1: ReLU(x @ W1x + a @ W1a + b1); MXU with f32 accumulation,
    # bias/relu in f32 on the VPU (rides in spare slots under the matmuls).
    h = jnp.dot(x_ref[...], w1x_ref[...], preferred_element_type=jnp.float32)
    h = h + jnp.dot(a_ref[...], w1a_ref[...], preferred_element_type=jnp.float32)
    h = jnp.maximum(h + b1_ref[...], 0.0)

    # Hidden layer 2: ReLU(h @ W2 + b2)
    h = jnp.dot(h.astype(w2_ref.dtype), w2_ref[...],
                preferred_element_type=jnp.float32)
    h = jnp.maximum(h + b2_ref[...], 0.0)

    # Fused heads: lanes [0:latent) = mu, [latent:2*latent) = logstd, rest is
    # zero padding (sliced off in the wrapper).
    z = jnp.dot(h.astype(wh_ref.dtype), wh_ref[...],
                preferred_element_type=jnp.float32)
    z = z + bh_ref[...]

    # exp after clip -> finite on every lane; exp on the (<=128-wide) mu lanes
    # is EUP-slot filler for small latent.  Mask is precomputed host-side.
    std = jnp.exp(jnp.clip(z, MIN_LOGSTD, MAX_LOGSTD))
    is_logstd = jnp.broadcast_to(m_ref[...], z.shape) > 0.5
    out_ref[...] = jnp.where(is_logstd, std, z).astype(out_ref.dtype)


def pack_params(params, obs_dim, action_dim, compute_dtype=jnp.bfloat16):
    """Split W1 into x/action parts, fuse the two heads, zero-pad feature dims
    to multiples of 128, cast matmul operands to `compute_dtype` and build the
    logstd lane mask.  Done once, outside the kernel."""
    hidden = params["w2"].shape[0]
    latent = params["wmu"].shape[1]
    hp = _round_up(hidden, 128)
    out_p = _round_up(max(2 * latent, 128), 128)

    def pad2(w, rows, cols):
        return jnp.pad(w, ((0, rows - w.shape[0]), (0, cols - w.shape[1])))

    w1x = params["w1"][:obs_dim]
    w1a = params["w1"][obs_dim:obs_dim + action_dim]
    wh = jnp.concatenate([params["wmu"], params["wls"]], axis=1)
    bh = jnp.concatenate([params["bmu"], params["bls"]], axis=1)

    # 1.0 on logstd lanes, 0.0 on mu / padding lanes (hoisted out of the body).
    mask = jnp.zeros((1, out_p), jnp.float32).at[0, latent:2 * latent].set(1.0)

    packed = {
        "w1x": pad2(w1x, obs_dim, hp).astype(compute_dtype),
        "w1a": pad2(w1a, action_dim, hp).astype(compute_dtype),
        "b1": pad2(params["b1"], 1, hp).astype(jnp.float32),
        "w2": pad2(params["w2"], hp, hp).astype(compute_dtype),
        "b2": pad2(params["b2"], 1, hp).astype(jnp.float32),
        "wh": pad2(wh, hp, out_p).astype(compute_dtype),
        "bh": pad2(bh, 1, out_p).astype(jnp.float32),
        "mask": mask,
    }
    meta = {"obs_dim": obs_dim, "action_dim": action_dim,
            "hidden_pad": hp, "out_pad": out_p, "latent": latent,
            "compute_dtype": jnp.dtype(compute_dtype)}
    return packed, meta


def _choose_batch_tiling(B, batch_tile, sublane):
    """Pick (tile_rows, padded_batch, num_tiles) with bounded padding waste and
    >= 2 grid steps for large batches (v7x megacore)."""
    b_al = _round_up(max(B, 1), sublane)
    n = max(1, -(-b_al // max(batch_tile, sublane)))
    # Once the batch is big enough that an extra grid step (~0.35us) is free,
    # force >= 2 steps so both v7x TensorCores get work.
    if n == 1 and b_al >= max(2 * sublane, 256):
        n = 2
    tb = _round_up(-(-b_al // n), sublane)
    bp = n * tb
    return tb, bp, n


def vae_encoder(x, action, packed, meta, *, batch_tile=1024, out_dtype=None):
    """Returns (mu, std) of the Normal distribution produced by VAEEncoder."""
    B = x.shape[0]
    obs_dim, act_dim = meta["obs_dim"], meta["action_dim"]
    hp, out_p, latent = meta["hidden_pad"], meta["out_pad"], meta["latent"]
    compute_dtype = meta["compute_dtype"]
    cbytes = compute_dtype.itemsize
    if out_dtype is None:
        # bf16 output slab on the bf16 path halves the lane-padded writeback.
        out_dtype = jnp.bfloat16 if cbytes == 2 else jnp.float32
    obytes = jnp.dtype(out_dtype).itemsize

    sublane = 16 if cbytes == 2 else 8
    tb, bp, n_tiles = _choose_batch_tiling(B, batch_tile, sublane)

    if bp != B:
        x = jnp.pad(x, ((0, bp - B), (0, 0)))
        action = jnp.pad(action, ((0, bp - B), (0, 0)))
    x = x.astype(compute_dtype)
    action = action.astype(compute_dtype)

    # VMEM budget: resident weights (x2 for safety if double-buffered),
    # double-buffered x/action/out tiles, f32 intermediates, plus headroom.
    # Clamp to 56 MiB so big configs stay legal on v7x (64 MiB physical).
    weight_bytes = ((obs_dim + act_dim + hp) * hp + hp * out_p) * cbytes \
        + (2 * hp + 2 * out_p) * 4
    act_bytes = 2 * tb * ((obs_dim + act_dim) * cbytes + out_p * obytes)
    interm_bytes = 4 * tb * (hp + out_p) * 4
    vmem_limit = int(min(
        max(32 * _MIB, 2 * weight_bytes + act_bytes + interm_bytes + 4 * _MIB),
        56 * _MIB))

    flops = 2 * bp * (obs_dim * hp + act_dim * hp + hp * hp + hp * out_p)
    bytes_accessed = (bp * (obs_dim + act_dim) * cbytes        # activations in
                      + weight_bytes                           # weights/biases
                      + out_p * 4                              # lane mask
                      + bp * out_p * obytes)                   # output slab

    def run(weight_mode):
        def wspec(shape):
            if weight_mode is None:
                return pl.BlockSpec(shape, lambda i: (0, 0))
            return pl.BlockSpec(shape, lambda i: (0, 0),
                                pipeline_mode=weight_mode)

        return pl.pallas_call(
            _vae_encoder_kernel,
            out_shape=jax.ShapeDtypeStruct((bp, out_p), out_dtype),
            grid_spec=pltpu.PrefetchScalarGridSpec(
                num_scalar_prefetch=0,
                grid=(n_tiles,),
                in_specs=[
                    pl.BlockSpec((tb, obs_dim), lambda i: (i, 0)),  # x (streamed)
                    pl.BlockSpec((tb, act_dim), lambda i: (i, 0)),  # action (streamed)
                    wspec((obs_dim, hp)),   # W1x (resident)
                    wspec((act_dim, hp)),   # W1a (resident)
                    wspec((1, hp)),         # b1
                    wspec((hp, hp)),        # W2
                    wspec((1, hp)),         # b2
                    wspec((hp, out_p)),     # fused head weight
                    wspec((1, out_p)),      # fused head bias
                    wspec((1, out_p)),      # logstd lane mask
                ],
                out_specs=pl.BlockSpec((tb, out_p), lambda i: (i, 0)),
            ),
            compiler_params=pltpu.CompilerParams(
                dimension_semantics=("parallel",),
                vmem_limit_bytes=vmem_limit,
            ),
            cost_estimate=pl.CostEstimate(
                flops=flops,
                transcendentals=bp * out_p,
                bytes_accessed=bytes_accessed,
            ),
        )(x, action, packed["w1x"], packed["w1a"], packed["b1"],
          packed["w2"], packed["b2"], packed["wh"], packed["bh"],
          packed["mask"])

    try:
        # Single-buffer the constant-index (resident) weights: halves their
        # VMEM footprint; x/action/out keep the default double buffering.
        out = run(pl.Buffered(1))
    except Exception:
        # pipeline_mode not supported by this jax build -> default buffering.
        out = run(None)

    mu = out[:B, :latent].astype(jnp.float32)
    std = out[:B, latent:2 * latent].astype(jnp.float32)
    return mu, std


def init_params(key, obs_dim, action_dim, hidden_size, latent_size):
    ks = jax.random.split(key, 8)
    d_in = obs_dim + action_dim
    scale = 0.1
    return {
        "w1": scale * jax.random.normal(ks[0], (d_in, hidden_size), jnp.float32),
        "b1": scale * jax.random.normal(ks[1], (1, hidden_size), jnp.float32),
        "w2": scale * jax.random.normal(ks[2], (hidden_size, hidden_size), jnp.float32),
        "b2": scale * jax.random.normal(ks[3], (1, hidden_size), jnp.float32),
        "wmu": scale * jax.random.normal(ks[4], (hidden_size, latent_size), jnp.float32),
        "bmu": scale * jax.random.normal(ks[5], (1, latent_size), jnp.float32),
        "wls": scale * jax.random.normal(ks[6], (hidden_size, latent_size), jnp.float32),
        "bls": scale * jax.random.normal(ks[7], (1, latent_size), jnp.float32),
    }


def _reference(x, action, params):
    """Plain-JAX reference (same math as the PyTorch forward)."""
    xa = jnp.concatenate([x, action], axis=-1)
    h = jnp.maximum(xa @ params["w1"] + params["b1"], 0.0)
    h = jnp.maximum(h @ params["w2"] + params["b2"], 0.0)
    mu = h @ params["wmu"] + params["bmu"]
    std = jnp.exp(jnp.clip(h @ params["wls"] + params["bls"],
                           MIN_LOGSTD, MAX_LOGSTD))
    return mu, std


if __name__ == "__main__":
    B, OBS, ACT, HIDDEN, LATENT = 8, 16, 4, 32, 8

    key = jax.random.PRNGKey(0)
    kx, ka, kp, kx2, ka2 = jax.random.split(key, 5)
    x = jax.random.normal(kx, (B, OBS), jnp.float32)
    action = jax.random.normal(ka, (B, ACT), jnp.float32)
    params = init_params(kp, OBS, ACT, HIDDEN, LATENT)
    mu_ref, std_ref = _reference(x, action, params)

    # Exact f32 path.
    packed32, meta32 = pack_params(params, OBS, ACT, jnp.float32)
    mu, std = vae_encoder(x, action, packed32, meta32)
    jax.block_until_ready((mu, std))
    assert mu.shape == (B, LATENT) and std.shape == (B, LATENT)
    assert jnp.allclose(mu, mu_ref, atol=1e-5, rtol=1e-5)
    assert jnp.allclose(std, std_ref, atol=1e-5, rtol=1e-5)

    # Default bf16-operand path (f32 accumulation / elementwise, bf16 out slab).
    packed16, meta16 = pack_params(params, OBS, ACT)
    mu16, std16 = vae_encoder(x, action, packed16, meta16)
    jax.block_until_ready((mu16, std16))
    assert jnp.allclose(mu16, mu_ref, atol=5e-2, rtol=5e-2)
    assert jnp.allclose(std16, std_ref, atol=5e-2, rtol=5e-2)

    # Multi-tile grid + batch padding path (exercises the adaptive tiling).
    B2 = 40
    x2 = jax.random.normal(kx2, (B2, OBS), jnp.float32)
    a2 = jax.random.normal(ka2, (B2, ACT), jnp.float32)
    mu_ref2, std_ref2 = _reference(x2, a2, params)
    mu2, std2 = vae_encoder(x2, a2, packed16, meta16, batch_tile=16)
    jax.block_until_ready((mu2, std2))
    assert mu2.shape == (B2, LATENT) and std2.shape == (B2, LATENT)
    assert jnp.allclose(mu2, mu_ref2, atol=5e-2, rtol=5e-2)
    assert jnp.allclose(std2, std_ref2, atol=5e-2, rtol=5e-2)

    # TODO(synk): torch.distributions.Normal object itself has no Pallas
    # equivalent; the kernel returns its (mu, std) parameterization.
    print("KERNEL_OK")
</pallas_src>

<mosaic_0001>
module attributes {stable_mosaic.version = 11 : i64} {
  func.func @_vae_encoder_kernel(%arg0: i32, %arg1: memref<8x16xf32, #tpu.memory_space<vmem>>, %arg2: memref<8x4xf32, #tpu.memory_space<vmem>>, %arg3: memref<16x128xf32, #tpu.memory_space<vmem>>, %arg4: memref<4x128xf32, #tpu.memory_space<vmem>>, %arg5: memref<1x128xf32, #tpu.memory_space<vmem>>, %arg6: memref<128x128xf32, #tpu.memory_space<vmem>>, %arg7: memref<1x128xf32, #tpu.memory_space<vmem>>, %arg8: memref<128x128xf32, #tpu.memory_space<vmem>>, %arg9: memref<1x128xf32, #tpu.memory_space<vmem>>, %arg10: memref<1x128xf32, #tpu.memory_space<vmem>>, %arg11: memref<8x128xf32, #tpu.memory_space<vmem>>) attributes {dimension_semantics = [#tpu.dimension_semantics<parallel>], iteration_bounds = array<i64: 1>, scalar_prefetch = 0 : i64, scratch_operands = 0 : i64, tpu.core_type = #tpu.core_type<tc>, window_params = [{transform_indices = @transform_0, window_bounds = array<i64: 8, 16>}, {transform_indices = @transform_1, window_bounds = array<i64: 8, 4>}, {pipeline_mode = #tpu.pipeline_mode<synchronous>, transform_indices = @transform_2, window_bounds = array<i64: 16, 128>}, {pipeline_mode = #tpu.pipeline_mode<synchronous>, transform_indices = @transform_3, window_bounds = array<i64: 4, 128>}, {pipeline_mode = #tpu.pipeline_mode<synchronous>, transform_indices = @transform_4, window_bounds = array<i64: 1, 128>}, {pipeline_mode = #tpu.pipeline_mode<synchronous>, transform_indices = @transform_5, window_bounds = array<i64: 128, 128>}, {pipeline_mode = #tpu.pipeline_mode<synchronous>, transform_indices = @transform_6, window_bounds = array<i64: 1, 128>}, {pipeline_mode = #tpu.pipeline_mode<synchronous>, transform_indices = @transform_7, window_bounds = array<i64: 128, 128>}, {pipeline_mode = #tpu.pipeline_mode<synchronous>, transform_indices = @transform_8, window_bounds = array<i64: 1, 128>}, {pipeline_mode = #tpu.pipeline_mode<synchronous>, transform_indices = @transform_9, window_bounds = array<i64: 1, 128>}, {transform_indices = @transform_10, window_bounds = array<i64: 8, 128>}]} {
    %c0 = arith.constant 0 : index
    %c0_0 = arith.constant 0 : index
    %0 = vector.load %arg1[%c0, %c0_0] : memref<8x16xf32, #tpu.memory_space<vmem>>, vector<8x16xf32>
    %c0_1 = arith.constant 0 : index
    %c0_2 = arith.constant 0 : index
    %1 = vector.load %arg3[%c0_1, %c0_2] : memref<16x128xf32, #tpu.memory_space<vmem>>, vector<16x128xf32>
    %cst = arith.constant dense<0.000000e+00> : vector<8x128xf32>
    %2 = tpu.matmul %0, %1, %cst {dimension_numbers = #tpu.dot_dimension_numbers<[1], [0], [0], [1], [0, 0, 1, 1], [], []>} : vector<8x16xf32>, vector<16x128xf32>, vector<8x128xf32> -> vector<8x128xf32>
    %c0_3 = arith.constant 0 : index
    %c0_4 = arith.constant 0 : index
    %3 = vector.load %arg2[%c0_3, %c0_4] : memref<8x4xf32, #tpu.memory_space<vmem>>, vector<8x4xf32>
    %c0_5 = arith.constant 0 : index
    %c0_6 = arith.constant 0 : index
    %4 = vector.load %arg4[%c0_5, %c0_6] : memref<4x128xf32, #tpu.memory_space<vmem>>, vector<4x128xf32>
    %cst_7 = arith.constant dense<0.000000e+00> : vector<8x128xf32>
    %5 = tpu.matmul %3, %4, %cst_7 {dimension_numbers = #tpu.dot_dimension_numbers<[1], [0], [0], [1], [0, 0, 1, 1], [], []>} : vector<8x4xf32>, vector<4x128xf32>, vector<8x128xf32> -> vector<8x128xf32>
    %6 = arith.addf %2, %5 : vector<8x128xf32>
    %c0_8 = arith.constant 0 : index
    %c0_9 = arith.constant 0 : index
    %7 = vector.load %arg5[%c0_8, %c0_9] : memref<1x128xf32, #tpu.memory_space<vmem>>, vector<1x128xf32>
    %8 = vector.broadcast %7 : vector<1x128xf32> to vector<8x128xf32>
    %9 = arith.addf %6, %8 : vector<8x128xf32>
    %cst_10 = arith.constant 0.000000e+00 : f32
    %10 = vector.broadcast %cst_10 : f32 to vector<8x128xf32>
    %11 = arith.maximumf %9, %10 : vector<8x128xf32>
    %c0_11 = arith.constant 0 : index
    %c0_12 = arith.constant 0 : index
    %12 = vector.load %arg6[%c0_11, %c0_12] : memref<128x128xf32, #tpu.memory_space<vmem>>, vector<128x128xf32>
    %cst_13 = arith.constant dense<0.000000e+00> : vector<8x128xf32>
    %13 = tpu.matmul %11, %12, %cst_13 {dimension_numbers = #tpu.dot_dimension_numbers<[1], [0], [0], [1], [0, 0, 1, 1], [], []>} : vector<8x128xf32>, vector<128x128xf32>, vector<8x128xf32> -> vector<8x128xf32>
    %c0_14 = arith.constant 0 : index
    %c0_15 = arith.constant 0 : index
    %14 = vector.load %arg7[%c0_14, %c0_15] : memref<1x128xf32, #tpu.memory_space<vmem>>, vector<1x128xf32>
    %15 = vector.broadcast %14 : vector<1x128xf32> to vector<8x128xf32>
    %16 = arith.addf %13, %15 : vector<8x128xf32>
    %cst_16 = arith.constant 0.000000e+00 : f32
    %17 = vector.broadcast %cst_16 : f32 to vector<8x128xf32>
    %18 = arith.maximumf %16, %17 : vector<8x128xf32>
    %c0_17 = arith.constant 0 : index
    %c0_18 = arith.constant 0 : index
    %19 = vector.load %arg8[%c0_17, %c0_18] : memref<128x128xf32, #tpu.memory_space<vmem>>, vector<128x128xf32>
    %cst_19 = arith.constant dense<0.000000e+00> : vector<8x128xf32>
    %20 = tpu.matmul %18, %19, %cst_19 {dimension_numbers = #tpu.dot_dimension_numbers<[1], [0], [0], [1], [0, 0, 1, 1], [], []>} : vector<8x128xf32>, vector<128x128xf32>, vector<8x128xf32> -> vector<8x128xf32>
    %c0_20 = arith.constant 0 : index
    %c0_21 = arith.constant 0 : index
    %21 = vector.load %arg9[%c0_20, %c0_21] : memref<1x128xf32, #tpu.memory_space<vmem>>, vector<1x128xf32>
    %22 = vector.broadcast %21 : vector<1x128xf32> to vector<8x128xf32>
    %23 = arith.addf %20, %22 : vector<8x128xf32>
    %cst_22 = arith.constant -2.000000e+01 : f32
    %cst_23 = arith.constant 2.000000e+00 : f32
    %24 = vector.broadcast %cst_22 : f32 to vector<8x128xf32>
    %25 = arith.maximumf %24, %23 : vector<8x128xf32>
    %26 = vector.broadcast %cst_23 : f32 to vector<8x128xf32>
    %27 = arith.minimumf %26, %25 : vector<8x128xf32>
    %28 = math.exp %27 : vector<8x128xf32>
    %c0_24 = arith.constant 0 : index
    %c0_25 = arith.constant 0 : index
    %29 = vector.load %arg10[%c0_24, %c0_25] : memref<1x128xf32, #tpu.memory_space<vmem>>, vector<1x128xf32>
    %30 = vector.shape_cast %29 : vector<1x128xf32> to vector<1x128xf32>
    %31 = vector.broadcast %30 : vector<1x128xf32> to vector<8x128xf32>
    %cst_26 = arith.constant 5.000000e-01 : f32
    %32 = vector.broadcast %cst_26 : f32 to vector<8x128xf32>
    %33 = arith.cmpf ogt, %31, %32 : vector<8x128xf32>
    %34 = arith.select %33, %28, %23 : vector<8x128xi1>, vector<8x128xf32>
    %c0_27 = arith.constant 0 : index
    %c0_28 = arith.constant 0 : index
    %35 = vector.load %arg11[%c0_27, %c0_28] : memref<8x128xf32, #tpu.memory_space<vmem>>, vector<8x128xf32>
    tpu.vector_store %arg11[%c0_27, %c0_28], %34 {strides = array<i32>} : memref<8x128xf32, #tpu.memory_space<vmem>>, vector<8x128xf32>,
    return
  }
  func.func @transform_0(%arg0: i32) -> (i32, i32) {
    %c0_i32 = arith.constant 0 : i32
    %c0_i32_0 = arith.constant 0 : i32
    return %arg0, %c0_i32 : i32, i32
  }
  func.func @transform_1(%arg0: i32) -> (i32, i32) {
    %c0_i32 = arith.constant 0 : i32
    %c0_i32_0 = arith.constant 0 : i32
    return %arg0, %c0_i32 : i32, i32
  }
  func.func @transform_2(%arg0: i32) -> (i32, i32) {
    %c0_i32 = arith.constant 0 : i32
    %c0_i32_0 = arith.constant 0 : i32
    %c0_i32_1 = arith.constant 0 : i32
    return %c0_i32, %c0_i32_0 : i32, i32
  }
  func.func @transform_3(%arg0: i32) -> (i32, i32) {
    %c0_i32 = arith.constant 0 : i32
    %c0_i32_0 = arith.constant 0 : i32
    %c0_i32_1 = arith.constant 0 : i32
    return %c0_i32, %c0_i32_0 : i32, i32
  }
  func.func @transform_4(%arg0: i32) -> (i32, i32) {
    %c0_i32 = arith.constant 0 : i32
    %c0_i32_0 = arith.constant 0 : i32
    %c0_i32_1 = arith.constant 0 : i32
    return %c0_i32, %c0_i32_0 : i32, i32
  }
  func.func @transform_5(%arg0: i32) -> (i32, i32) {
    %c0_i32 = arith.constant 0 : i32
    %c0_i32_0 = arith.constant 0 : i32
    %c0_i32_1 = arith.constant 0 : i32
    return %c0_i32, %c0_i32_0 : i32, i32
  }
  func.func @transform_6(%arg0: i32) -> (i32, i32) {
    %c0_i32 = arith.constant 0 : i32
    %c0_i32_0 = arith.constant 0 : i32
    %c0_i32_1 = arith.constant 0 : i32
    return %c0_i32, %c0_i32_0 : i32, i32
  }
  func.func @transform_7(%arg0: i32) -> (i32, i32) {
    %c0_i32 = arith.constant 0 : i32
    %c0_i32_0 = arith.constant 0 : i32
    %c0_i32_1 = arith.constant 0 : i32
    return %c0_i32, %c0_i32_0 : i32, i32
  }
  func.func @transform_8(%arg0: i32) -> (i32, i32) {
    %c0_i32 = arith.constant 0 : i32
    %c0_i32_0 = arith.constant 0 : i32
    %c0_i32_1 = arith.constant 0 : i32
    return %c0_i32, %c0_i32_0 : i32, i32
  }
  func.func @transform_9(%arg0: i32) -> (i32, i32) {
    %c0_i32 = arith.constant 0 : i32
    %c0_i32_0 = arith.constant 0 : i32
    %c0_i32_1 = arith.constant 0 : i32
    return %c0_i32, %c0_i32_0 : i32, i32
  }
  func.func @transform_10(%arg0: i32) -> (i32, i32) {
    %c0_i32 = arith.constant 0 : i32
    %c0_i32_0 = arith.constant 0 : i32
    return %arg0, %c0_i32 : i32, i32
  }
}

module attributes {stable_mosaic.version = 11 : i64} {
  func.func @_vae_encoder_kernel(%arg0: i32, %arg1: memref<8x16xf32, #tpu.memory_space<vmem>>, %arg2: memref<8x4xf32, #tpu.memory_space<vmem>>, %arg3: memref<16x128xf32, #tpu.memory_space<vmem>>, %arg4: memref<4x128xf32, #tpu.memory_space<vmem>>, %arg5: memref<1x128xf32, #tpu.memory_space<vmem>>, %arg6: memref<128x128xf32, #tpu.memory_space<vmem>>, %arg7: memref<1x128xf32, #tpu.memory_space<vmem>>, %arg8: memref<128x128xf32, #tpu.memory_space<vmem>>, %arg9: memref<1x128xf32, #tpu.memory_space<vmem>>, %arg10: memref<1x128xf32, #tpu.memory_space<vmem>>, %arg11: memref<8x128xf32, #tpu.memory_space<vmem>>) attributes {dimension_semantics = [#tpu.dimension_semantics<parallel>], iteration_bounds = array<i64: 1>, scalar_prefetch = 0 : i64, scratch_operands = 0 : i64, tpu.core_type = #tpu.core_type<tc>, window_params = [{transform_indices = @transform_0, window_bounds = array<i64: 8, 16>}, {transform_indices = @transform_1, window_bounds = array<i64: 8, 4>}, {pipeline_mode = #tpu.pipeline_mode<synchronous>, transform_indices = @transform_2, window_bounds = array<i64: 16, 128>}, {pipeline_mode = #tpu.pipeline_mode<synchronous>, transform_indices = @transform_3, window_bounds = array<i64: 4, 128>}, {pipeline_mode = #tpu.pipeline_mode<synchronous>, transform_indices = @transform_4, window_bounds = array<i64: 1, 128>}, {pipeline_mode = #tpu.pipeline_mode<synchronous>, transform_indices = @transform_5, window_bounds = array<i64: 128, 128>}, {pipeline_mode = #tpu.pipeline_mode<synchronous>, transform_indices = @transform_6, window_bounds = array<i64: 1, 128>}, {pipeline_mode = #tpu.pipeline_mode<synchronous>, transform_indices = @transform_7, window_bounds = array<i64: 128, 128>}, {pipeline_mode = #tpu.pipeline_mode<synchronous>, transform_indices = @transform_8, window_bounds = array<i64: 1, 128>}, {pipeline_mode = #tpu.pipeline_mode<synchronous>, transform_indices = @transform_9, window_bounds = array<i64: 1, 128>}, {transform_indices = @transform_10, window_bounds = array<i64: 8, 128>}]} {
    %c0 = arith.constant 0 : index
    %c0_0 = arith.constant 0 : index
    %0 = vector.load %arg1[%c0, %c0_0] : memref<8x16xf32, #tpu.memory_space<vmem>>, vector<8x16xf32>
    %c0_1 = arith.constant 0 : index
    %c0_2 = arith.constant 0 : index
    %1 = vector.load %arg3[%c0_1, %c0_2] : memref<16x128xf32, #tpu.memory_space<vmem>>, vector<16x128xf32>
    %cst = arith.constant dense<0.000000e+00> : vector<8x128xf32>
    %2 = tpu.matmul %0, %1, %cst {dimension_numbers = #tpu.dot_dimension_numbers<[1], [0], [0], [1], [0, 0, 1, 1], [], []>} : vector<8x16xf32>, vector<16x128xf32>, vector<8x128xf32> -> vector<8x128xf32>
    %c0_3 = arith.constant 0 : index
    %c0_4 = arith.constant 0 : index
    %3 = vector.load %arg2[%c0_3, %c0_4] : memref<8x4xf32, #tpu.memory_space<vmem>>, vector<8x4xf32>
    %c0_5 = arith.constant 0 : index
    %c0_6 = arith.constant 0 : index
    %4 = vector.load %arg4[%c0_5, %c0_6] : memref<4x128xf32, #tpu.memory_space<vmem>>, vector<4x128xf32>
    %cst_7 = arith.constant dense<0.000000e+00> : vector<8x128xf32>
    %5 = tpu.matmul %3, %4, %cst_7 {dimension_numbers = #tpu.dot_dimension_numbers<[1], [0], [0], [1], [0, 0, 1, 1], [], []>} : vector<8x4xf32>, vector<4x128xf32>, vector<8x128xf32> -> vector<8x128xf32>
    %6 = arith.addf %2, %5 : vector<8x128xf32>
    %c0_8 = arith.constant 0 : index
    %c0_9 = arith.constant 0 : index
    %7 = vector.load %arg5[%c0_8, %c0_9] : memref<1x128xf32, #tpu.memory_space<vmem>>, vector<1x128xf32>
    %8 = vector.broadcast %7 : vector<1x128xf32> to vector<8x128xf32>
    %9 = arith.addf %6, %8 : vector<8x128xf32>
    %cst_10 = arith.constant 0.000000e+00 : f32
    %10 = vector.broadcast %cst_10 : f32 to vector<8x128xf32>
    %11 = arith.maximumf %9, %10 : vector<8x128xf32>
    %c0_11 = arith.constant 0 : index
    %c0_12 = arith.constant 0 : index
    %12 = vector.load %arg6[%c0_11, %c0_12] : memref<128x128xf32, #tpu.memory_space<vmem>>, vector<128x128xf32>
    %cst_13 = arith.constant dense<0.000000e+00> : vector<8x128xf32>
    %13 = tpu.matmul %11, %12, %cst_13 {dimension_numbers = #tpu.dot_dimension_numbers<[1], [0], [0], [1], [0, 0, 1, 1], [], []>} : vector<8x128xf32>, vector<128x128xf32>, vector<8x128xf32> -> vector<8x128xf32>
    %c0_14 = arith.constant 0 : index
    %c0_15 = arith.constant 0 : index
    %14 = vector.load %arg7[%c0_14, %c0_15] : memref<1x128xf32, #tpu.memory_space<vmem>>, vector<1x128xf32>
    %15 = vector.broadcast %14 : vector<1x128xf32> to vector<8x128xf32>
    %16 = arith.addf %13, %15 : vector<8x128xf32>
    %cst_16 = arith.constant 0.000000e+00 : f32
    %17 = vector.broadcast %cst_16 : f32 to vector<8x128xf32>
    %18 = arith.maximumf %16, %17 : vector<8x128xf32>
    %c0_17 = arith.constant 0 : index
    %c0_18 = arith.constant 0 : index
    %19 = vector.load %arg8[%c0_17, %c0_18] : memref<128x128xf32, #tpu.memory_space<vmem>>, vector<128x128xf32>
    %cst_19 = arith.constant dense<0.000000e+00> : vector<8x128xf32>
    %20 = tpu.matmul %18, %19, %cst_19 {dimension_numbers = #tpu.dot_dimension_numbers<[1], [0], [0], [1], [0, 0, 1, 1], [], []>} : vector<8x128xf32>, vector<128x128xf32>, vector<8x128xf32> -> vector<8x128xf32>
    %c0_20 = arith.constant 0 : index
    %c0_21 = arith.constant 0 : index
    %21 = vector.load %arg9[%c0_20, %c0_21] : memref<1x128xf32, #tpu.memory_space<vmem>>, vector<1x128xf32>
    %22 = vector.broadcast %21 : vector<1x128xf32> to vector<8x128xf32>
    %23 = arith.addf %20, %22 : vector<8x128xf32>
    %cst_22 = arith.constant -2.000000e+01 : f32
    %cst_23 = arith.constant 2.000000e+00 : f32
    %24 = vector.broadcast %cst_22 : f32 to vector<8x128xf32>
    %25 = arith.maximumf %24, %23 : vector<8x128xf32>
    %26 = vector.broadcast %cst_23 : f32 to vector<8x128xf32>
    %27 = arith.minimumf %26, %25 : vector<8x128xf32>
    %28 = math.exp %27 : vector<8x128xf32>
    %c0_24 = arith.constant 0 : index
    %c0_25 = arith.constant 0 : index
    %29 = vector.load %arg10[%c0_24, %c0_25] : memref<1x128xf32, #tpu.memory_space<vmem>>, vector<1x128xf32>
    %30 = vector.shape_cast %29 : vector<1x128xf32> to vector<1x128xf32>
    %31 = vector.broadcast %30 : vector<1x128xf32> to vector<8x128xf32>
    %cst_26 = arith.constant 5.000000e-01 : f32
    %32 = vector.broadcast %cst_26 : f32 to vector<8x128xf32>
    %33 = arith.cmpf ogt, %31, %32 : vector<8x128xf32>
    %34 = arith.select %33, %28, %23 : vector<8x128xi1>, vector<8x128xf32>
    %c0_27 = arith.constant 0 : index
    %c0_28 = arith.constant 0 : index
    %35 = vector.load %arg11[%c0_27, %c0_28] : memref<8x128xf32, #tpu.memory_space<vmem>>, vector<8x128xf32>
    tpu.vector_store %arg11[%c0_27, %c0_28], %34 {strides = array<i32>} : memref<8x128xf32, #tpu.memory_space<vmem>>, vector<8x128xf32>,
    return
  }
  func.func @transform_0(%arg0: i32) -> (i32, i32) {
    %c0_i32 = arith.constant 0 : i32
    %c0_i32_0 = arith.constant 0 : i32
    return %arg0, %c0_i32 : i32, i32
  }
  func.func @transform_1(%arg0: i32) -> (i32, i32) {
    %c0_i32 = arith.constant 0 : i32
    %c0_i32_0 = arith.constant 0 : i32
    return %arg0, %c0_i32 : i32, i32
  }
  func.func @transform_2(%arg0: i32) -> (i32, i32) {
    %c0_i32 = arith.constant 0 : i32
    %c0_i32_0 = arith.constant 0 : i32
    %c0_i32_1 = arith.constant 0 : i32
    return %c0_i32, %c0_i32_0 : i32, i32
  }
  func.func @transform_3(%arg0: i32) -> (i32, i32) {
    %c0_i32 = arith.constant 0 : i32
    %c0_i32_0 = arith.constant 0 : i32
    %c0_i32_1 = arith.constant 0 : i32
    return %c0_i32, %c0_i32_0 : i32, i32
  }
  func.func @transform_4(%arg0: i32) -> (i32, i32) {
    %c0_i32 = arith.constant 0 : i32
    %c0_i32_0 = arith.constant 0 : i32
    %c0_i32_1 = arith.constant 0 : i32
    return %c0_i32, %c0_i32_0 : i32, i32
  }
  func.func @transform_5(%arg0: i32) -> (i32, i32) {
    %c0_i32 = arith.constant 0 : i32
    %c0_i32_0 = arith.constant 0 : i32
    %c0_i32_1 = arith.constant 0 : i32
    return %c0_i32, %c0_i32_0 : i32, i32
  }
  func.func @transform_6(%arg0: i32) -> (i32, i32) {
    %c0_i32 = arith.constant 0 : i32
    %c0_i32_0 = arith.constant 0 : i32
    %c0_i32_1 = arith.constant 0 : i32
    return %c0_i32, %c0_i32_0 : i32, i32
  }
  func.func @transform_7(%arg0: i32) -> (i32, i32) {
    %c0_i32 = arith.constant 0 : i32
    %c0_i32_0 = arith.constant 0 : i32
    %c0_i32_1 = arith.constant 0 : i32
    return %c0_i32, %c0_i32_0 : i32, i32
  }
  func.func @transform_8(%arg0: i32) -> (i32, i32) {
    %c0_i32 = arith.constant 0 : i32
    %c0_i32_0 = arith.constant 0 : i32
    %c0_i32_1 = arith.constant 0 : i32
    return %c0_i32, %c0_i32_0 : i32, i32
  }
  func.func @transform_9(%arg0: i32) -> (i32, i32) {
    %c0_i32 = arith.constant 0 : i32
    %c0_i32_0 = arith.constant 0 : i32
    %c0_i32_1 = arith.constant 0 : i32
    return %c0_i32, %c0_i32_0 : i32, i32
  }
  func.func @transform_10(%arg0: i32) -> (i32, i32) {
    %c0_i32 = arith.constant 0 : i32
    %c0_i32_0 = arith.constant 0 : i32
    return %arg0, %c0_i32 : i32, i32
  }
}

</mosaic_0001>

<llo_original>
// kernel: tpu_custom_call.1
$region0: #{tpu_custom_call.1}
  #allocation0 [shape = 'u32[]', space=smem, size = 0x4, offset = 0x4, fixed_abs, tag = 'smem constant byte address 0x4 - core index']
  #allocation1 [shape = 'u32[144,128]{1,0:T(1,128)}', space=vmem, size = 0x12000, scoped, tag = 'internal scratch']
  %s0 = inlined_call_operand.vmem [shape: f32[8,16], index: 0, kind: input, shape index: {}]
  %s1 = inlined_call_operand.vmem [shape: f32[8,4], index: 1, kind: input, shape index: {}]
  %s2 = inlined_call_operand.hbm [shape: f32[16,128], index: 2, kind: input, shape index: {}]
  %s3 = inlined_call_operand.vmem [shape: f32[4,128], index: 3, kind: input, shape index: {}]
  %s4 = inlined_call_operand.vmem [shape: f32[1,128], index: 4, kind: input, shape index: {}]
  %s5 = inlined_call_operand.hbm [shape: f32[128,128], index: 5, kind: input, shape index: {}]
  %s6 = inlined_call_operand.vmem [shape: f32[1,128], index: 6, kind: input, shape index: {}]
  %s7 = inlined_call_operand.hbm [shape: f32[128,128], index: 7, kind: input, shape index: {}]
  %s8 = inlined_call_operand.vmem [shape: f32[1,128], index: 8, kind: input, shape index: {}]
  %s9 = inlined_call_operand.vmem [shape: f32[1,128], index: 9, kind: input, shape index: {}]
  %s10 = inlined_call_operand.hbm [shape: f32[8,128], index: 10, kind: output, shape index: {}]
  %s11 = sld [smem:[#allocation0]]
  $region62: #{tpu_custom_call.1} parent=0
    _
  %s13 = ssub.s32 1, %s11
  %s14 = scalar_select 0, %s13, %s11
  $region1: #{tpu_custom_call.1} parent=0
    #allocation2 [shape = 'u8[8192]{0}', space=vmem, size = 0x2000, scoped, tag = 'input window, operand 2, single buffered']
    #allocation3 [shape = 's32[1]{0}', space=sflag, size = 0x4, scoped, tag = 'scoped memory for tpu_custom_call.1']
    #allocation4 [shape = 's32[1]{0}', space=sflag, size = 0x4, scoped, tag = 'scoped memory for tpu_custom_call.1']
    #allocation5 [shape = 'u8[65536]{0}', space=vmem, size = 0x10000, scoped, tag = 'input window, operand 5, single buffered']
    #allocation6 [shape = 's32[1]{0}', space=sflag, size = 0x4, scoped, tag = 'scoped memory for tpu_custom_call.1']
    #allocation7 [shape = 'u8[65536]{0}', space=vmem, size = 0x10000, scoped, tag = 'input window, operand 7, single buffered']
    #allocation8 [shape = 'u8[4096]{0}', space=vmem, size = 0x1000, scoped, tag = 'output window, operand 0, single buffered']
    %15 = vsyncpa [#allocation3], 0
    %16 = vsyncpa [#allocation6], 0
    %17 = vsyncpa [#allocation4], 0
    // Predicated region
    $region2: #{tpu_custom_call.1} parent=1 // pred_check
      _
    $region3: #{tpu_custom_call.1} parent=1 // pred_check_branch
      %19 = sbr.rel (0) target = $region5
    $region4: #{tpu_custom_call.1} parent=1 // pred_region
      _
    $region5: #{tpu_custom_call.1} parent=1 // pred_fallthru
      _
    // Predicated region
    $region6: #{tpu_custom_call.1} parent=1 // pred_check
      _
    $region7: #{tpu_custom_call.1} parent=1 // pred_check_branch
      %21 = sbr.rel (0) target = $region9
    $region8: #{tpu_custom_call.1} parent=1 // pred_region
      _
    $region9: #{tpu_custom_call.1} parent=1 // pred_fallthru
      _
    // Predicated region
    $region10: #{tpu_custom_call.1} parent=1 // pred_check
      _
    $region11: #{tpu_custom_call.1} parent=1 // pred_check_branch
      %23 = sbr.rel (0) target = $region13
    $region12: #{tpu_custom_call.1} parent=1 // pred_region
      %s25 = ssub.s32 256, 256
      %26 = vsyncadd [#allocation3], %s25
      %s27 = sshll.u32 [#allocation2], 4
      %s28 = int_to_ptr.vmem [resolvable:$true] %s27
      %33 = dma.hbm_to_vmem [thread:$0]  %s2, 256, %s28, [#allocation3], 128, 128, 8
    $region13: #{tpu_custom_call.1} parent=1 // pred_fallthru
      _
    // Predicated region
    $region14: #{tpu_custom_call.1} parent=1 // pred_check
      _
    $region15: #{tpu_custom_call.1} parent=1 // pred_check_branch
      %35 = sbr.rel (0) target = $region17
    $region16: #{tpu_custom_call.1} parent=1 // pred_region
      _
    $region17: #{tpu_custom_call.1} parent=1 // pred_fallthru
      _
    // Predicated region
    $region18: #{tpu_custom_call.1} parent=1 // pred_check
      _
    $region19: #{tpu_custom_call.1} parent=1 // pred_check_branch
      %37 = sbr.rel (0) target = $region21
    $region20: #{tpu_custom_call.1} parent=1 // pred_region
      _
    $region21: #{tpu_custom_call.1} parent=1 // pred_fallthru
      _
    // Predicated region
    $region22: #{tpu_custom_call.1} parent=1 // pred_check
      _
    $region23: #{tpu_custom_call.1} parent=1 // pred_check_branch
      %39 = sbr.rel (0) target = $region25
    $region24: #{tpu_custom_call.1} parent=1 // pred_region
      %s41 = ssub.s32 2048, 2048
      %42 = vsyncadd [#allocation6], %s41
      %s43 = sshll.u32 [#allocation5], 4
      %s44 = int_to_ptr.vmem [resolvable:$true] %s43
      %49 = dma.hbm_to_vmem [thread:$0]  %s5, 2048, %s44, [#allocation6], 128, 128, 8
    $region25: #{tpu_custom_call.1} parent=1 // pred_fallthru
      _
    // Predicated region
    $region26: #{tpu_custom_call.1} parent=1 // pred_check
      _
    $region27: #{tpu_custom_call.1} parent=1 // pred_check_branch
      %51 = sbr.rel (0) target = $region29
    $region28: #{tpu_custom_call.1} parent=1 // pred_region
      _
    $region29: #{tpu_custom_call.1} parent=1 // pred_fallthru
      _
    // Predicated region
    $region30: #{tpu_custom_call.1} parent=1 // pred_check
      _
    $region31: #{tpu_custom_call.1} parent=1 // pred_check_branch
      %53 = sbr.rel (0) target = $region33
    $region32: #{tpu_custom_call.1} parent=1 // pred_region
      %s55 = ssub.s32 2048, 2048
      %56 = vsyncadd [#allocation6], %s55
      %s57 = sshll.u32 [#allocation7], 4
      %s58 = int_to_ptr.vmem [resolvable:$true] %s57
      %63 = dma.hbm_to_vmem [thread:$0]  %s7, 2048, %s58, [#allocation6], 128, 128, 8
    $region33: #{tpu_custom_call.1} parent=1 // pred_fallthru
      _
    // Predicated region
    $region34: #{tpu_custom_call.1} parent=1 // pred_check
      _
    $region35: #{tpu_custom_call.1} parent=1 // pred_check_branch
      %65 = sbr.rel (0) target = $region37
    $region36: #{tpu_custom_call.1} parent=1 // pred_region
      _
    $region37: #{tpu_custom_call.1} parent=1 // pred_fallthru
      _
    // Predicated region
    $region38: #{tpu_custom_call.1} parent=1 // pred_check
      _
    $region39: #{tpu_custom_call.1} parent=1 // pred_check_branch
      %67 = sbr.rel (0) target = $region41
    $region40: #{tpu_custom_call.1} parent=1 // pred_region
      _
    $region41: #{tpu_custom_call.1} parent=1 // pred_fallthru
      _
    // Predicated region
    $region42: #{tpu_custom_call.1} parent=1 // pred_check
      _
    $region43: #{tpu_custom_call.1} parent=1 // pred_check_branch
      %69 = sbr.rel (0) target = $region45
    $region44: #{tpu_custom_call.1} parent=1 // pred_region
      %70 = dma.done [#allocation3], 256
    $region45: #{tpu_custom_call.1} parent=1 // pred_fallthru
      _
    // Predicated region
    $region46: #{tpu_custom_call.1} parent=1 // pred_check
      _
    $region47: #{tpu_custom_call.1} parent=1 // pred_check_branch
      %72 = sbr.rel (0) target = $region49
    $region48: #{tpu_custom_call.1} parent=1 // pred_region
      %73 = dma.done [#allocation6], 2048
    $region49: #{tpu_custom_call.1} parent=1 // pred_fallthru
      _
    // Predicated region
    $region50: #{tpu_custom_call.1} parent=1 // pred_check
      _
    $region51: #{tpu_custom_call.1} parent=1 // pred_check_branch
      %75 = sbr.rel (0) target = $region53
    $region52: #{tpu_custom_call.1} parent=1 // pred_region
      %76 = dma.done [#allocation6], 2048
    $region53: #{tpu_custom_call.1} parent=1 // pred_fallthru
      _
    %v77 = vld [vmem:[%s0] sm:$0xff]
    %v78 = vld [vmem:[#allocation2] sm:$0xff]
    %v79 = vld [vmem:[#allocation2 + $0x8] sm:$0xff]
    %v80 = vld [vmem:[%s1] sm:$0xff]
    %v81 = vld [vmem:[%s3] sm:$0xf]
    %vm82 = vcmask 31744
    %v84 = vsel %vm82, %v80, 0
    %vm86 = vcmask 1043456
    %v88 = vsel %vm86, %v81, 0
    %90 = vmatprep.subr.mxu0 0.0
    %91 = vmatpush1.msra.mxu0 0.0
    %92 = vmatprep.subr.mxu0 0.0
    %93 = vmatpush1.msra.mxu0 0.0
    %94 = vmatprep.subr.mxu0 0.0
    %95 = vmatpush1.msra.mxu0 0.0
    %96 = vmatprep.subr.mxu0 0.0
    %97 = vmatpush1.msra.mxu0 0.0
    %98 = vmatprep.subr.mxu0 0.0
    %99 = vmatpush1.msra.mxu0 0.0
    %100 = vmatprep.subr.mxu0 0.0
    %101 = vmatpush1.msra.mxu0 0.0
    %102 = vmatprep.subr.mxu0 0.0
    %103 = vmatpush1.msra.mxu0 0.0
    %104 = vmatprep.subr.mxu0 0.0
    %105 = vmatpush1.msra.mxu0 0.0
    %106 = vmatprep.subr.mxu0 0.0
    %107 = vmatpush1.msra.mxu0 0.0
    %108 = vmatprep.subr.mxu0 0.0
    %109 = vmatpush1.msra.mxu0 0.0
    %110 = vmatprep.subr.mxu0 0.0
    %111 = vmatpush1.msra.mxu0 0.0
    %112 = vmatprep.subr.mxu0 0.0
    %113 = vmatpush1.msra.mxu0 0.0
    %114 = vmatprep.subr.mxu0 0.0
    %115 = vmatpush1.msra.mxu0 0.0
    %116 = vmatprep.subr.mxu0 0.0
    %117 = vmatpush1.msra.mxu0 0.0
    %118 = vmatprep.subr.mxu0 0.0
    %119 = vmatpush1.msra.mxu0 0.0
    %120 = vmatprep.subr.mxu0 0.0
    %121 = vmatpush1.msra.mxu0 %v88
    %122 = vmatprep.subr.mxu0 0.0
    %123 = vmatpush2.msra.mxu0 0.0
    %124 = vmatprep.subr.mxu0 0.0
    %125 = vmatpush2.msra.mxu0 0.0
    %126 = vmatprep.subr.mxu0 0.0
    %127 = vmatpush2.msra.mxu0 0.0
    %128 = vmatprep.subr.mxu0 0.0
    %129 = vmatpush2.msra.mxu0 0.0
    %130 = vmatprep.subr.mxu0 0.0
    %131 = vmatpush2.msra.mxu0 0.0
    %132 = vmatprep.subr.mxu0 0.0
    %133 = vmatpush2.msra.mxu0 0.0
    %134 = vmatprep.subr.mxu0 0.0
    %135 = vmatpush2.msra.mxu0 0.0
    %136 = vmatprep.subr.mxu0 0.0
    %137 = vmatpush2.msra.mxu0 0.0
    %138 = vmatprep.subr.mxu0 0.0
    %139 = vmatpush2.msra.mxu0 0.0
    %140 = vmatprep.subr.mxu0 0.0
    %141 = vmatpush2.msra.mxu0 0.0
    %142 = vmatprep.subr.mxu0 0.0
    %143 = vmatpush2.msra.mxu0 0.0
    %144 = vmatprep.subr.mxu0 0.0
    %145 = vmatpush2.msra.mxu0 0.0
    %146 = vmatprep.subr.mxu0 0.0
    %147 = vmatpush2.msra.mxu0 0.0
    %148 = vmatprep.subr.mxu0 0.0
    %149 = vmatpush2.msra.mxu0 0.0
    %150 = vmatprep.subr.mxu0 0.0
    %151 = vmatpush2.msra.mxu0 0.0
    %152 = vmatprep.subr.mxu0 0.0
    %153 = vmatpush2.msra.mxu0 0.0
    %154 = vmatprep.mubr.f32.mxu0 0.0
    %155 = vmatmul.mubr.f32.gmra.mxu0 %v84
    %v156 = vpop.f32.mrf.mxu0
    %v157 = vadd.f32 0.0, %v156
    %v158 = vpop.f32.mrf.mxu0
    %159 = vdwg.mxu0
    %vm160 = vcmask 130048
    %v162 = vsel %vm160, %v77, 0
    %164 = vmatprep.subr.mxu0 0.0
    %165 = vmatpush1.msra.mxu0 0.0
    %166 = vmatprep.subr.mxu0 0.0
    %167 = vmatpush1.msra.mxu0 0.0
    %168 = vmatprep.subr.mxu0 0.0
    %169 = vmatpush1.msra.mxu0 0.0
    %170 = vmatprep.subr.mxu0 0.0
    %171 = vmatpush1.msra.mxu0 0.0
    %172 = vmatprep.subr.mxu0 0.0
    %173 = vmatpush1.msra.mxu0 0.0
    %174 = vmatprep.subr.mxu0 0.0
    %175 = vmatpush1.msra.mxu0 0.0
    %176 = vmatprep.subr.mxu0 0.0
    %177 = vmatpush1.msra.mxu0 0.0
    %178 = vmatprep.subr.mxu0 0.0
    %179 = vmatpush1.msra.mxu0 0.0
    %180 = vmatprep.subr.mxu0 0.0
    %181 = vmatpush1.msra.mxu0 0.0
    %182 = vmatprep.subr.mxu0 0.0
    %183 = vmatpush1.msra.mxu0 0.0
    %184 = vmatprep.subr.mxu0 0.0
    %185 = vmatpush1.msra.mxu0 0.0
    %186 = vmatprep.subr.mxu0 0.0
    %187 = vmatpush1.msra.mxu0 0.0
    %188 = vmatprep.subr.mxu0 0.0
    %189 = vmatpush1.msra.mxu0 0.0
    %190 = vmatprep.subr.mxu0 0.0
    %191 = vmatpush1.msra.mxu0 0.0
    %192 = vmatprep.subr.mxu0 0.0
    %193 = vmatpush1.msra.mxu0 %v79
    %194 = vmatprep.subr.mxu0 0.0
    %195 = vmatpush1.msra.mxu0 %v78
    %196 = vmatprep.subr.mxu0 0.0
    %197 = vmatpush2.msra.mxu0 0.0
    %198 = vmatprep.subr.mxu0 0.0
    %199 = vmatpush2.msra.mxu0 0.0
    %200 = vmatprep.subr.mxu0 0.0
    %201 = vmatpush2.msra.mxu0 0.0
    %202 = vmatprep.subr.mxu0 0.0
    %203 = vmatpush2.msra.mxu0 0.0
    %204 = vmatprep.subr.mxu0 0.0
    %205 = vmatpush2.msra.mxu0 0.0
    %206 = vmatprep.subr.mxu0 0.0
    %207 = vmatpush2.msra.mxu0 0.0
    %208 = vmatprep.subr.mxu0 0.0
    %209 = vmatpush2.msra.mxu0 0.0
    %210 = vmatprep.subr.mxu0 0.0
    %211 = vmatpush2.msra.mxu0 0.0
    %212 = vmatprep.subr.mxu0 0.0
    %213 = vmatpush2.msra.mxu0 0.0
    %214 = vmatprep.subr.mxu0 0.0
    %215 = vmatpush2.msra.mxu0 0.0
    %216 = vmatprep.subr.mxu0 0.0
    %217 = vmatpush2.msra.mxu0 0.0
    %218 = vmatprep.subr.mxu0 0.0
    %219 = vmatpush2.msra.mxu0 0.0
    %220 = vmatprep.subr.mxu0 0.0
    %221 = vmatpush2.msra.mxu0 0.0
    %222 = vmatprep.subr.mxu0 0.0
    %223 = vmatpush2.msra.mxu0 0.0
    %224 = vmatprep.subr.mxu0 0.0
    %225 = vmatpush2.msra.mxu0 0.0
    %226 = vmatprep.subr.mxu0 0.0
    %227 = vmatpush2.msra.mxu0 0.0
    %228 = vmatprep.mubr.f32.mxu0 0.0
    %229 = vmatmul.mubr.f32.gmra.mxu0 %v162
    %v230 = vpop.f32.mrf.mxu0
    %v231 = vadd.f32 %v157, %v230
    %v232 = vpop.f32.mrf.mxu0
    %233 = vdwg.mxu0
    %v234 = vld [vmem:[%s4] sm:$0x1]
    %v236 = vlaneseq
    %v237 = vshrl.u32 %v236, 7
    %v238 = vsub.s32 0, %v237
    %v239 = vrot.slane %v234, %v238
    %v241 = vadd.f32 %v231, %v239
    %v242 = vmax.f32 %v241, 0.0
    %v243 = vld [vmem:[#allocation5] sm:$0xff]
    %v244 = vld [vmem:[#allocation5 + $0x8] sm:$0xff]
    %v245 = vld [vmem:[#allocation5 + $0x10] sm:$0xff]
    %v246 = vld [vmem:[#allocation5 + $0x18] sm:$0xff]
    %v247 = vld [vmem:[#allocation5 + $0x20] sm:$0xff]
    %v248 = vld [vmem:[#allocation5 + $0x28] sm:$0xff]
    %v249 = vld [vmem:[#allocation5 + $0x30] sm:$0xff]
    %v250 = vld [vmem:[#allocation5 + $0x38] sm:$0xff]
    %v251 = vld [vmem:[#allocation5 + $0x40] sm:$0xff]
    %v252 = vld [vmem:[#allocation5 + $0x48] sm:$0xff]
    %v253 = vld [vmem:[#allocation5 + $0x50] sm:$0xff]
    %v254 = vld [vmem:[#allocation5 + $0x58] sm:$0xff]
    %v255 = vld [vmem:[#allocation5 + $0x60] sm:$0xff]
    %v256 = vld [vmem:[#allocation5 + $0x68] sm:$0xff]
    %v257 = vld [vmem:[#allocation5 + $0x70] sm:$0xff]
    %v258 = vld [vmem:[#allocation5 + $0x78] sm:$0xff]
    %v259 = vld [vmem:[%s6] sm:$0x1]
    %v261 = vlaneseq
    %v262 = vshrl.u32 %v261, 7
    %v263 = vsub.s32 0, %v262
    %v264 = vrot.slane %v259, %v263
    %266 = vmatprep.subr.mxu0 0.0
    %267 = vmatpush1.msra.mxu0 %v258
    %268 = vmatprep.subr.mxu0 0.0
    %269 = vmatpush1.msra.mxu0 %v257
    %270 = vmatprep.subr.mxu0 0.0
    %271 = vmatpush1.msra.mxu0 %v256
    %272 = vmatprep.subr.mxu0 0.0
    %273 = vmatpush1.msra.mxu0 %v255
    %274 = vmatprep.subr.mxu0 0.0
    %275 = vmatpush1.msra.mxu0 %v254
    %276 = vmatprep.subr.mxu0 0.0
    %277 = vmatpush1.msra.mxu0 %v253
    %278 = vmatprep.subr.mxu0 0.0
    %279 = vmatpush1.msra.mxu0 %v252
    %280 = vmatprep.subr.mxu0 0.0
    %281 = vmatpush1.msra.mxu0 %v251
    %282 = vmatprep.subr.mxu0 0.0
    %283 = vmatpush1.msra.mxu0 %v250
    %284 = vmatprep.subr.mxu0 0.0
    %285 = vmatpush1.msra.mxu0 %v249
    %286 = vmatprep.subr.mxu0 0.0
    %287 = vmatpush1.msra.mxu0 %v248
    %288 = vmatprep.subr.mxu0 0.0
    %289 = vmatpush1.msra.mxu0 %v247
    %290 = vmatprep.subr.mxu0 0.0
    %291 = vmatpush1.msra.mxu0 %v246
    %292 = vmatprep.subr.mxu0 0.0
    %293 = vmatpush1.msra.mxu0 %v245
    %294 = vmatprep.subr.mxu0 0.0
    %295 = vmatpush1.msra.mxu0 %v244
    %296 = vmatprep.subr.mxu0 0.0
    %297 = vmatpush1.msra.mxu0 %v243
    %298 = vmatprep.subr.mxu0 0.0
    %299 = vmatpush2.msra.mxu0 0.0
    %300 = vmatprep.subr.mxu0 0.0
    %301 = vmatpush2.msra.mxu0 0.0
    %302 = vmatprep.subr.mxu0 0.0
    %303 = vmatpush2.msra.mxu0 0.0
    %304 = vmatprep.subr.mxu0 0.0
    %305 = vmatpush2.msra.mxu0 0.0
    %306 = vmatprep.subr.mxu0 0.0
    %307 = vmatpush2.msra.mxu0 0.0
    %308 = vmatprep.subr.mxu0 0.0
    %309 = vmatpush2.msra.mxu0 0.0
    %310 = vmatprep.subr.mxu0 0.0
    %311 = vmatpush2.msra.mxu0 0.0
    %312 = vmatprep.subr.mxu0 0.0
    %313 = vmatpush2.msra.mxu0 0.0
    %314 = vmatprep.subr.mxu0 0.0
    %315 = vmatpush2.msra.mxu0 0.0
    %316 = vmatprep.subr.mxu0 0.0
    %317 = vmatpush2.msra.mxu0 0.0
    %318 = vmatprep.subr.mxu0 0.0
    %319 = vmatpush2.msra.mxu0 0.0
    %320 = vmatprep.subr.mxu0 0.0
    %321 = vmatpush2.msra.mxu0 0.0
    %322 = vmatprep.subr.mxu0 0.0
    %323 = vmatpush2.msra.mxu0 0.0
    %324 = vmatprep.subr.mxu0 0.0
    %325 = vmatpush2.msra.mxu0 0.0
    %326 = vmatprep.subr.mxu0 0.0
    %327 = vmatpush2.msra.mxu0 0.0
    %328 = vmatprep.subr.mxu0 0.0
    %329 = vmatpush2.msra.mxu0 0.0
    %330 = vmatprep.mubr.f32.mxu0 0.0
    %331 = vmatmul.mubr.f32.gmra.mxu0 %v242
    %v332 = vpop.f32.mrf.mxu0
    %v333 = vadd.f32 %v264, %v332
    %v334 = vpop.f32.mrf.mxu0
    %335 = vdwg.mxu0
    %v336 = vmax.f32 %v333, 0.0
    %v337 = vld [vmem:[#allocation7] sm:$0xff]
    %v338 = vld [vmem:[#allocation7 + $0x8] sm:$0xff]
    %v339 = vld [vmem:[#allocation7 + $0x10] sm:$0xff]
    %v340 = vld [vmem:[#allocation7 + $0x18] sm:$0xff]
    %v341 = vld [vmem:[#allocation7 + $0x20] sm:$0xff]
    %v342 = vld [vmem:[#allocation7 + $0x28] sm:$0xff]
    %v343 = vld [vmem:[#allocation7 + $0x30] sm:$0xff]
    %v344 = vld [vmem:[#allocation7 + $0x38] sm:$0xff]
    %v345 = vld [vmem:[#allocation7 + $0x40] sm:$0xff]
    %v346 = vld [vmem:[#allocation7 + $0x48] sm:$0xff]
    %v347 = vld [vmem:[#allocation7 + $0x50] sm:$0xff]
    %v348 = vld [vmem:[#allocation7 + $0x58] sm:$0xff]
    %v349 = vld [vmem:[#allocation7 + $0x60] sm:$0xff]
    %v350 = vld [vmem:[#allocation7 + $0x68] sm:$0xff]
    %v351 = vld [vmem:[#allocation7 + $0x70] sm:$0xff]
    %v352 = vld [vmem:[#allocation7 + $0x78] sm:$0xff]
    %v353 = vld [vmem:[%s8] sm:$0x1]
    %v355 = vlaneseq
    %v356 = vshrl.u32 %v355, 7
    %v357 = vsub.s32 0, %v356
    %v358 = vrot.slane %v353, %v357
    %360 = vmatprep.subr.mxu0 0.0
    %361 = vmatpush1.msra.mxu0 %v352
    %362 = vmatprep.subr.mxu0 0.0
    %363 = vmatpush1.msra.mxu0 %v351
    %364 = vmatprep.subr.mxu0 0.0
    %365 = vmatpush1.msra.mxu0 %v350
    %366 = vmatprep.subr.mxu0 0.0
    %367 = vmatpush1.msra.mxu0 %v349
    %368 = vmatprep.subr.mxu0 0.0
    %369 = vmatpush1.msra.mxu0 %v348
    %370 = vmatprep.subr.mxu0 0.0
    %371 = vmatpush1.msra.mxu0 %v347
    %372 = vmatprep.subr.mxu0 0.0
    %373 = vmatpush1.msra.mxu0 %v346
    %374 = vmatprep.subr.mxu0 0.0
    %375 = vmatpush1.msra.mxu0 %v345
    %376 = vmatprep.subr.mxu0 0.0
    %377 = vmatpush1.msra.mxu0 %v344
    %378 = vmatprep.subr.mxu0 0.0
    %379 = vmatpush1.msra.mxu0 %v343
    %380 = vmatprep.subr.mxu0 0.0
    %381 = vmatpush1.msra.mxu0 %v342
    %382 = vmatprep.subr.mxu0 0.0
    %383 = vmatpush1.msra.mxu0 %v341
    %384 = vmatprep.subr.mxu0 0.0
    %385 = vmatpush1.msra.mxu0 %v340
    %386 = vmatprep.subr.mxu0 0.0
    %387 = vmatpush1.msra.mxu0 %v339
    %388 = vmatprep.subr.mxu0 0.0
    %389 = vmatpush1.msra.mxu0 %v338
    %390 = vmatprep.subr.mxu0 0.0
    %391 = vmatpush1.msra.mxu0 %v337
    %392 = vmatprep.subr.mxu0 0.0
    %393 = vmatpush2.msra.mxu0 0.0
    %394 = vmatprep.subr.mxu0 0.0
    %395 = vmatpush2.msra.mxu0 0.0
    %396 = vmatprep.subr.mxu0 0.0
    %397 = vmatpush2.msra.mxu0 0.0
    %398 = vmatprep.subr.mxu0 0.0
    %399 = vmatpush2.msra.mxu0 0.0
    %400 = vmatprep.subr.mxu0 0.0
    %401 = vmatpush2.msra.mxu0 0.0
    %402 = vmatprep.subr.mxu0 0.0
    %403 = vmatpush2.msra.mxu0 0.0
    %404 = vmatprep.subr.mxu0 0.0
    %405 = vmatpush2.msra.mxu0 0.0
    %406 = vmatprep.subr.mxu0 0.0
    %407 = vmatpush2.msra.mxu0 0.0
    %408 = vmatprep.subr.mxu0 0.0
    %409 = vmatpush2.msra.mxu0 0.0
    %410 = vmatprep.subr.mxu0 0.0
    %411 = vmatpush2.msra.mxu0 0.0
    %412 = vmatprep.subr.mxu0 0.0
    %413 = vmatpush2.msra.mxu0 0.0
    %414 = vmatprep.subr.mxu0 0.0
    %415 = vmatpush2.msra.mxu0 0.0
    %416 = vmatprep.subr.mxu0 0.0
    %417 = vmatpush2.msra.mxu0 0.0
    %418 = vmatprep.subr.mxu0 0.0
    %419 = vmatpush2.msra.mxu0 0.0
    %420 = vmatprep.subr.mxu0 0.0
    %421 = vmatpush2.msra.mxu0 0.0
    %422 = vmatprep.subr.mxu0 0.0
    %423 = vmatpush2.msra.mxu0 0.0
    %424 = vmatprep.mubr.f32.mxu0 0.0
    %425 = vmatmul.mubr.f32.gmra.mxu0 %v336
    %v426 = vpop.f32.mrf.mxu0
    %v427 = vadd.f32 %v358, %v426
    %v428 = vpop.f32.mrf.mxu0
    %429 = vdwg.mxu0
    %v430 = vmax.f32 %v427, -20.0
    %v431 = vmin.f32 %v430, 2.0
    %v432 = vmul.f32 %v431, 1.442695
    %v433 = vpow.pop %v432
    %v434 = vld [vmem:[%s9] sm:$0x1]
    %v436 = vlaneseq
    %v437 = vshrl.u32 %v436, 7
    %v438 = vsub.s32 0, %v437
    %v439 = vrot.slane %v434, %v438
    %vm441 = vcmp.gt.f32.partialorder %v439, 0.5
    %v442 = vsel %vm441, %v433, %v427
    %443 = vst [vmem:[#allocation8] sm:$0xff] %v442
    // Predicated region
    $region54: #{tpu_custom_call.1} parent=1 // pred_check
      _
    $region55: #{tpu_custom_call.1} parent=1 // pred_check_branch
      %445 = sbr.rel (0) target = $region57
    $region56: #{tpu_custom_call.1} parent=1 // pred_region
      %s447 = ssub.s32 128, 128
      %448 = vsyncadd [#allocation4], %s447
      %s450 = sshll.u32 [#allocation8], 4
      %s451 = int_to_ptr.vmem [resolvable:$true] %s450
      %453 = dma.vmem_to_hbm [thread:$0]  %s451, 128, %s10, [#allocation4]
    $region57: #{tpu_custom_call.1} parent=1 // pred_fallthru
      _
    // Predicated region
    $region58: #{tpu_custom_call.1} parent=1 // pred_check
      _
    $region59: #{tpu_custom_call.1} parent=1 // pred_check_branch
      %455 = sbr.rel (0) target = $region61
    $region60: #{tpu_custom_call.1} parent=1 // pred_region
      %456 = dma.done [#allocation4], 128
    $region61: #{tpu_custom_call.1} parent=1 // pred_fallthru
      _
    %457 = vsyncpa [#allocation3], 1
    %458 = vsyncpa [#allocation6], 1
    %459 = vsyncpa [#allocation4], 1

// kernel: tpu_custom_call.1
$region0: #{tpu_custom_call.1}
  #allocation0 [shape = 'u32[]', space=smem, size = 0x4, offset = 0x4, fixed_abs, tag = 'smem constant byte address 0x4 - core index']
  #allocation1 [shape = 'u32[144,128]{1,0:T(1,128)}', space=vmem, size = 0x12000, scoped, tag = 'internal scratch']
  %s0 = inlined_call_operand.vmem [shape: f32[8,16], index: 0, kind: input, shape index: {}]
  %s1 = inlined_call_operand.vmem [shape: f32[8,4], index: 1, kind: input, shape index: {}]
  %s2 = inlined_call_operand.hbm [shape: f32[16,128], index: 2, kind: input, shape index: {}]
  %s3 = inlined_call_operand.vmem [shape: f32[4,128], index: 3, kind: input, shape index: {}]
  %s4 = inlined_call_operand.vmem [shape: f32[1,128], index: 4, kind: input, shape index: {}]
  %s5 = inlined_call_operand.hbm [shape: f32[128,128], index: 5, kind: input, shape index: {}]
  %s6 = inlined_call_operand.vmem [shape: f32[1,128], index: 6, kind: input, shape index: {}]
  %s7 = inlined_call_operand.hbm [shape: f32[128,128], index: 7, kind: input, shape index: {}]
  %s8 = inlined_call_operand.vmem [shape: f32[1,128], index: 8, kind: input, shape index: {}]
  %s9 = inlined_call_operand.vmem [shape: f32[1,128], index: 9, kind: input, shape index: {}]
  %s10 = inlined_call_operand.hbm [shape: f32[8,128], index: 10, kind: output, shape index: {}]
  %s11 = sld [smem:[#allocation0]]
  $region62: #{tpu_custom_call.1} parent=0
    _
  %s13 = ssub.s32 1, %s11
  %s14 = scalar_select 0, %s13, %s11
  $region1: #{tpu_custom_call.1} parent=0
    #allocation2 [shape = 'u8[8192]{0}', space=vmem, size = 0x2000, scoped, tag = 'input window, operand 2, single buffered']
    #allocation3 [shape = 's32[1]{0}', space=sflag, size = 0x4, scoped, tag = 'scoped memory for tpu_custom_call.1']
    #allocation4 [shape = 's32[1]{0}', space=sflag, size = 0x4, scoped, tag = 'scoped memory for tpu_custom_call.1']
    #allocation5 [shape = 'u8[65536]{0}', space=vmem, size = 0x10000, scoped, tag = 'input window, operand 5, single buffered']
    #allocation6 [shape = 's32[1]{0}', space=sflag, size = 0x4, scoped, tag = 'scoped memory for tpu_custom_call.1']
    #allocation7 [shape = 'u8[65536]{0}', space=vmem, size = 0x10000, scoped, tag = 'input window, operand 7, single buffered']
    #allocation8 [shape = 'u8[4096]{0}', space=vmem, size = 0x1000, scoped, tag = 'output window, operand 0, single buffered']
    %15 = vsyncpa [#allocation3], 0
    %16 = vsyncpa [#allocation6], 0
    %17 = vsyncpa [#allocation4], 0
    // Predicated region
    $region2: #{tpu_custom_call.1} parent=1 // pred_check
      _
    $region3: #{tpu_custom_call.1} parent=1 // pred_check_branch
      %19 = sbr.rel (0) target = $region5
    $region4: #{tpu_custom_call.1} parent=1 // pred_region
      _
    $region5: #{tpu_custom_call.1} parent=1 // pred_fallthru
      _
    // Predicated region
    $region6: #{tpu_custom_call.1} parent=1 // pred_check
      _
    $region7: #{tpu_custom_call.1} parent=1 // pred_check_branch
      %21 = sbr.rel (0) target = $region9
    $region8: #{tpu_custom_call.1} parent=1 // pred_region
      _
    $region9: #{tpu_custom_call.1} parent=1 // pred_fallthru
      _
    // Predicated region
    $region10: #{tpu_custom_call.1} parent=1 // pred_check
      _
    $region11: #{tpu_custom_call.1} parent=1 // pred_check_branch
      %23 = sbr.rel (0) target = $region13
    $region12: #{tpu_custom_call.1} parent=1 // pred_region
      %s25 = ssub.s32 256, 256
      %26 = vsyncadd [#allocation3], %s25
      %s27 = sshll.u32 [#allocation2], 4
      %s28 = int_to_ptr.vmem [resolvable:$true] %s27
      %33 = dma.hbm_to_vmem [thread:$0]  %s2, 256, %s28, [#allocation3], 128, 128, 8
    $region13: #{tpu_custom_call.1} parent=1 // pred_fallthru
      _
    // Predicated region
    $region14: #{tpu_custom_call.1} parent=1 // pred_check
      _
    $region15: #{tpu_custom_call.1} parent=1 // pred_check_branch
      %35 = sbr.rel (0) target = $region17
    $region16: #{tpu_custom_call.1} parent=1 // pred_region
      _
    $region17: #{tpu_custom_call.1} parent=1 // pred_fallthru
      _
    // Predicated region
    $region18: #{tpu_custom_call.1} parent=1 // pred_check
      _
    $region19: #{tpu_custom_call.1} parent=1 // pred_check_branch
      %37 = sbr.rel (0) target = $region21
    $region20: #{tpu_custom_call.1} parent=1 // pred_region
      _
    $region21: #{tpu_custom_call.1} parent=1 // pred_fallthru
      _
    // Predicated region
    $region22: #{tpu_custom_call.1} parent=1 // pred_check
      _
    $region23: #{tpu_custom_call.1} parent=1 // pred_check_branch
      %39 = sbr.rel (0) target = $region25
    $region24: #{tpu_custom_call.1} parent=1 // pred_region
      %s41 = ssub.s32 2048, 2048
      %42 = vsyncadd [#allocation6], %s41
      %s43 = sshll.u32 [#allocation5], 4
      %s44 = int_to_ptr.vmem [resolvable:$true] %s43
      %49 = dma.hbm_to_vmem [thread:$0]  %s5, 2048, %s44, [#allocation6], 128, 128, 8
    $region25: #{tpu_custom_call.1} parent=1 // pred_fallthru
      _
    // Predicated region
    $region26: #{tpu_custom_call.1} parent=1 // pred_check
      _
    $region27: #{tpu_custom_call.1} parent=1 // pred_check_branch
      %51 = sbr.rel (0) target = $region29
    $region28: #{tpu_custom_call.1} parent=1 // pred_region
      _
    $region29: #{tpu_custom_call.1} parent=1 // pred_fallthru
      _
    // Predicated region
    $region30: #{tpu_custom_call.1} parent=1 // pred_check
      _
    $region31: #{tpu_custom_call.1} parent=1 // pred_check_branch
      %53 = sbr.rel (0) target = $region33
    $region32: #{tpu_custom_call.1} parent=1 // pred_region
      %s55 = ssub.s32 2048, 2048
      %56 = vsyncadd [#allocation6], %s55
      %s57 = sshll.u32 [#allocation7], 4
      %s58 = int_to_ptr.vmem [resolvable:$true] %s57
      %63 = dma.hbm_to_vmem [thread:$0]  %s7, 2048, %s58, [#allocation6], 128, 128, 8
    $region33: #{tpu_custom_call.1} parent=1 // pred_fallthru
      _
    // Predicated region
    $region34: #{tpu_custom_call.1} parent=1 // pred_check
      _
    $region35: #{tpu_custom_call.1} parent=1 // pred_check_branch
      %65 = sbr.rel (0) target = $region37
    $region36: #{tpu_custom_call.1} parent=1 // pred_region
      _
    $region37: #{tpu_custom_call.1} parent=1 // pred_fallthru
      _
    // Predicated region
    $region38: #{tpu_custom_call.1} parent=1 // pred_check
      _
    $region39: #{tpu_custom_call.1} parent=1 // pred_check_branch
      %67 = sbr.rel (0) target = $region41
    $region40: #{tpu_custom_call.1} parent=1 // pred_region
      _
    $region41: #{tpu_custom_call.1} parent=1 // pred_fallthru
      _
    // Predicated region
    $region42: #{tpu_custom_call.1} parent=1 // pred_check
      _
    $region43: #{tpu_custom_call.1} parent=1 // pred_check_branch
      %69 = sbr.rel (0) target = $region45
    $region44: #{tpu_custom_call.1} parent=1 // pred_region
      %70 = dma.done [#allocation3], 256
    $region45: #{tpu_custom_call.1} parent=1 // pred_fallthru
      _
    // Predicated region
    $region46: #{tpu_custom_call.1} parent=1 // pred_check
      _
    $region47: #{tpu_custom_call.1} parent=1 // pred_check_branch
      %72 = sbr.rel (0) target = $region49
    $region48: #{tpu_custom_call.1} parent=1 // pred_region
      %73 = dma.done [#allocation6], 2048
    $region49: #{tpu_custom_call.1} parent=1 // pred_fallthru
      _
    // Predicated region
    $region50: #{tpu_custom_call.1} parent=1 // pred_check
      _
    $region51: #{tpu_custom_call.1} parent=1 // pred_check_branch
      %75 = sbr.rel (0) target = $region53
    $region52: #{tpu_custom_call.1} parent=1 // pred_region
      %76 = dma.done [#allocation6], 2048
    $region53: #{tpu_custom_call.1} parent=1 // pred_fallthru
      _
    %v77 = vld [vmem:[%s0] sm:$0xff]
    %v78 = vld [vmem:[#allocation2] sm:$0xff]
    %v79 = vld [vmem:[#allocation2 + $0x8] sm:$0xff]
    %v80 = vld [vmem:[%s1] sm:$0xff]
    %v81 = vld [vmem:[%s3] sm:$0xf]
    %vm82 = vcmask 31744
    %v84 = vsel %vm82, %v80, 0
    %vm86 = vcmask 1043456
    %v88 = vsel %vm86, %v81, 0
    %90 = vmatprep.subr.mxu0 0.0
    %91 = vmatpush1.msra.mxu0 0.0
    %92 = vmatprep.subr.mxu0 0.0
    %93 = vmatpush1.msra.mxu0 0.0
    %94 = vmatprep.subr.mxu0 0.0
    %95 = vmatpush1.msra.mxu0 0.0
    %96 = vmatprep.subr.mxu0 0.0
    %97 = vmatpush1.msra.mxu0 0.0
    %98 = vmatprep.subr.mxu0 0.0
    %99 = vmatpush1.msra.mxu0 0.0
    %100 = vmatprep.subr.mxu0 0.0
    %101 = vmatpush1.msra.mxu0 0.0
    %102 = vmatprep.subr.mxu0 0.0
    %103 = vmatpush1.msra.mxu0 0.0
    %104 = vmatprep.subr.mxu0 0.0
    %105 = vmatpush1.msra.mxu0 0.0
    %106 = vmatprep.subr.mxu0 0.0
    %107 = vmatpush1.msra.mxu0 0.0
    %108 = vmatprep.subr.mxu0 0.0
    %109 = vmatpush1.msra.mxu0 0.0
    %110 = vmatprep.subr.mxu0 0.0
    %111 = vmatpush1.msra.mxu0 0.0
    %112 = vmatprep.subr.mxu0 0.0
    %113 = vmatpush1.msra.mxu0 0.0
    %114 = vmatprep.subr.mxu0 0.0
    %115 = vmatpush1.msra.mxu0 0.0
    %116 = vmatprep.subr.mxu0 0.0
    %117 = vmatpush1.msra.mxu0 0.0
    %118 = vmatprep.subr.mxu0 0.0
    %119 = vmatpush1.msra.mxu0 0.0
    %120 = vmatprep.subr.mxu0 0.0
    %121 = vmatpush1.msra.mxu0 %v88
    %122 = vmatprep.subr.mxu0 0.0
    %123 = vmatpush2.msra.mxu0 0.0
    %124 = vmatprep.subr.mxu0 0.0
    %125 = vmatpush2.msra.mxu0 0.0
    %126 = vmatprep.subr.mxu0 0.0
    %127 = vmatpush2.msra.mxu0 0.0
    %128 = vmatprep.subr.mxu0 0.0
    %129 = vmatpush2.msra.mxu0 0.0
    %130 = vmatprep.subr.mxu0 0.0
    %131 = vmatpush2.msra.mxu0 0.0
    %132 = vmatprep.subr.mxu0 0.0
    %133 = vmatpush2.msra.mxu0 0.0
    %134 = vmatprep.subr.mxu0 0.0
    %135 = vmatpush2.msra.mxu0 0.0
    %136 = vmatprep.subr.mxu0 0.0
    %137 = vmatpush2.msra.mxu0 0.0
    %138 = vmatprep.subr.mxu0 0.0
    %139 = vmatpush2.msra.mxu0 0.0
    %140 = vmatprep.subr.mxu0 0.0
    %141 = vmatpush2.msra.mxu0 0.0
    %142 = vmatprep.subr.mxu0 0.0
    %143 = vmatpush2.msra.mxu0 0.0
    %144 = vmatprep.subr.mxu0 0.0
    %145 = vmatpush2.msra.mxu0 0.0
    %146 = vmatprep.subr.mxu0 0.0
    %147 = vmatpush2.msra.mxu0 0.0
    %148 = vmatprep.subr.mxu0 0.0
    %149 = vmatpush2.msra.mxu0 0.0
    %150 = vmatprep.subr.mxu0 0.0
    %151 = vmatpush2.msra.mxu0 0.0
    %152 = vmatprep.subr.mxu0 0.0
    %153 = vmatpush2.msra.mxu0 0.0
    %154 = vmatprep.mubr.f32.mxu0 0.0
    %155 = vmatmul.mubr.f32.gmra.mxu0 %v84
    %v156 = vpop.f32.mrf.mxu0
    %v157 = vadd.f32 0.0, %v156
    %v158 = vpop.f32.mrf.mxu0
    %159 = vdwg.mxu0
    %vm160 = vcmask 130048
    %v162 = vsel %vm160, %v77, 0
    %164 = vmatprep.subr.mxu0 0.0
    %165 = vmatpush1.msra.mxu0 0.0
    %166 = vmatprep.subr.mxu0 0.0
    %167 = vmatpush1.msra.mxu0 0.0
    %168 = vmatprep.subr.mxu0 0.0
    %169 = vmatpush1.msra.mxu0 0.0
    %170 = vmatprep.subr.mxu0 0.0
    %171 = vmatpush1.msra.mxu0 0.0
    %172 = vmatprep.subr.mxu0 0.0
    %173 = vmatpush1.msra.mxu0 0.0
    %174 = vmatprep.subr.mxu0 0.0
    %175 = vmatpush1.msra.mxu0 0.0
    %176 = vmatprep.subr.mxu0 0.0
    %177 = vmatpush1.msra.mxu0 0.0
    %178 = vmatprep.subr.mxu0 0.0
    %179 = vmatpush1.msra.mxu0 0.0
    %180 = vmatprep.subr.mxu0 0.0
    %181 = vmatpush1.msra.mxu0 0.0
    %182 = vmatprep.subr.mxu0 0.0
    %183 = vmatpush1.msra.mxu0 0.0
    %184 = vmatprep.subr.mxu0 0.0
    %185 = vmatpush1.msra.mxu0 0.0
    %186 = vmatprep.subr.mxu0 0.0
    %187 = vmatpush1.msra.mxu0 0.0
    %188 = vmatprep.subr.mxu0 0.0
    %189 = vmatpush1.msra.mxu0 0.0
    %190 = vmatprep.subr.mxu0 0.0
    %191 = vmatpush1.msra.mxu0 0.0
    %192 = vmatprep.subr.mxu0 0.0
    %193 = vmatpush1.msra.mxu0 %v79
    %194 = vmatprep.subr.mxu0 0.0
    %195 = vmatpush1.msra.mxu0 %v78
    %196 = vmatprep.subr.mxu0 0.0
    %197 = vmatpush2.msra.mxu0 0.0
    %198 = vmatprep.subr.mxu0 0.0
    %199 = vmatpush2.msra.mxu0 0.0
    %200 = vmatprep.subr.mxu0 0.0
    %201 = vmatpush2.msra.mxu0 0.0
    %202 = vmatprep.subr.mxu0 0.0
    %203 = vmatpush2.msra.mxu0 0.0
    %204 = vmatprep.subr.mxu0 0.0
    %205 = vmatpush2.msra.mxu0 0.0
    %206 = vmatprep.subr.mxu0 0.0
    %207 = vmatpush2.msra.mxu0 0.0
    %208 = vmatprep.subr.mxu0 0.0
    %209 = vmatpush2.msra.mxu0 0.0
    %210 = vmatprep.subr.mxu0 0.0
    %211 = vmatpush2.msra.mxu0 0.0
    %212 = vmatprep.subr.mxu0 0.0
    %213 = vmatpush2.msra.mxu0 0.0
    %214 = vmatprep.subr.mxu0 0.0
    %215 = vmatpush2.msra.mxu0 0.0
    %216 = vmatprep.subr.mxu0 0.0
    %217 = vmatpush2.msra.mxu0 0.0
    %218 = vmatprep.subr.mxu0 0.0
    %219 = vmatpush2.msra.mxu0 0.0
    %220 = vmatprep.subr.mxu0 0.0
    %221 = vmatpush2.msra.mxu0 0.0
    %222 = vmatprep.subr.mxu0 0.0
    %223 = vmatpush2.msra.mxu0 0.0
    %224 = vmatprep.subr.mxu0 0.0
    %225 = vmatpush2.msra.mxu0 0.0
    %226 = vmatprep.subr.mxu0 0.0
    %227 = vmatpush2.msra.mxu0 0.0
    %228 = vmatprep.mubr.f32.mxu0 0.0
    %229 = vmatmul.mubr.f32.gmra.mxu0 %v162
    %v230 = vpop.f32.mrf.mxu0
    %v231 = vadd.f32 %v157, %v230
    %v232 = vpop.f32.mrf.mxu0
    %233 = vdwg.mxu0
    %v234 = vld [vmem:[%s4] sm:$0x1]
    %v236 = vlaneseq
    %v237 = vshrl.u32 %v236, 7
    %v238 = vsub.s32 0, %v237
    %v239 = vrot.slane %v234, %v238
    %v241 = vadd.f32 %v231, %v239
    %v242 = vmax.f32 %v241, 0.0
    %v243 = vld [vmem:[#allocation5] sm:$0xff]
    %v244 = vld [vmem:[#allocation5 + $0x8] sm:$0xff]
    %v245 = vld [vmem:[#allocation5 + $0x10] sm:$0xff]
    %v246 = vld [vmem:[#allocation5 + $0x18] sm:$0xff]
    %v247 = vld [vmem:[#allocation5 + $0x20] sm:$0xff]
    %v248 = vld [vmem:[#allocation5 + $0x28] sm:$0xff]
    %v249 = vld [vmem:[#allocation5 + $0x30] sm:$0xff]
    %v250 = vld [vmem:[#allocation5 + $0x38] sm:$0xff]
    %v251 = vld [vmem:[#allocation5 + $0x40] sm:$0xff]
    %v252 = vld [vmem:[#allocation5 + $0x48] sm:$0xff]
    %v253 = vld [vmem:[#allocation5 + $0x50] sm:$0xff]
    %v254 = vld [vmem:[#allocation5 + $0x58] sm:$0xff]
    %v255 = vld [vmem:[#allocation5 + $0x60] sm:$0xff]
    %v256 = vld [vmem:[#allocation5 + $0x68] sm:$0xff]
    %v257 = vld [vmem:[#allocation5 + $0x70] sm:$0xff]
    %v258 = vld [vmem:[#allocation5 + $0x78] sm:$0xff]
    %v259 = vld [vmem:[%s6] sm:$0x1]
    %v261 = vlaneseq
    %v262 = vshrl.u32 %v261, 7
    %v263 = vsub.s32 0, %v262
    %v264 = vrot.slane %v259, %v263
    %266 = vmatprep.subr.mxu0 0.0
    %267 = vmatpush1.msra.mxu0 %v258
    %268 = vmatprep.subr.mxu0 0.0
    %269 = vmatpush1.msra.mxu0 %v257
    %270 = vmatprep.subr.mxu0 0.0
    %271 = vmatpush1.msra.mxu0 %v256
    %272 = vmatprep.subr.mxu0 0.0
    %273 = vmatpush1.msra.mxu0 %v255
    %274 = vmatprep.subr.mxu0 0.0
    %275 = vmatpush1.msra.mxu0 %v254
    %276 = vmatprep.subr.mxu0 0.0
    %277 = vmatpush1.msra.mxu0 %v253
    %278 = vmatprep.subr.mxu0 0.0
    %279 = vmatpush1.msra.mxu0 %v252
    %280 = vmatprep.subr.mxu0 0.0
    %281 = vmatpush1.msra.mxu0 %v251
    %282 = vmatprep.subr.mxu0 0.0
    %283 = vmatpush1.msra.mxu0 %v250
    %284 = vmatprep.subr.mxu0 0.0
    %285 = vmatpush1.msra.mxu0 %v249
    %286 = vmatprep.subr.mxu0 0.0
    %287 = vmatpush1.msra.mxu0 %v248
    %288 = vmatprep.subr.mxu0 0.0
    %289 = vmatpush1.msra.mxu0 %v247
    %290 = vmatprep.subr.mxu0 0.0
    %291 = vmatpush1.msra.mxu0 %v246
    %292 = vmatprep.subr.mxu0 0.0
    %293 = vmatpush1.msra.mxu0 %v245
    %294 = vmatprep.subr.mxu0 0.0
    %295 = vmatpush1.msra.mxu0 %v244
    %296 = vmatprep.subr.mxu0 0.0
    %297 = vmatpush1.msra.mxu0 %v243
    %298 = vmatprep.subr.mxu0 0.0
    %299 = vmatpush2.msra.mxu0 0.0
    %300 = vmatprep.subr.mxu0 0.0
    %301 = vmatpush2.msra.mxu0 0.0
    %302 = vmatprep.subr.mxu0 0.0
    %303 = vmatpush2.msra.mxu0 0.0
    %304 = vmatprep.subr.mxu0 0.0
    %305 = vmatpush2.msra.mxu0 0.0
    %306 = vmatprep.subr.mxu0 0.0
    %307 = vmatpush2.msra.mxu0 0.0
    %308 = vmatprep.subr.mxu0 0.0
    %309 = vmatpush2.msra.mxu0 0.0
    %310 = vmatprep.subr.mxu0 0.0
    %311 = vmatpush2.msra.mxu0 0.0
    %312 = vmatprep.subr.mxu0 0.0
    %313 = vmatpush2.msra.mxu0 0.0
    %314 = vmatprep.subr.mxu0 0.0
    %315 = vmatpush2.msra.mxu0 0.0
    %316 = vmatprep.subr.mxu0 0.0
    %317 = vmatpush2.msra.mxu0 0.0
    %318 = vmatprep.subr.mxu0 0.0
    %319 = vmatpush2.msra.mxu0 0.0
    %320 = vmatprep.subr.mxu0 0.0
    %321 = vmatpush2.msra.mxu0 0.0
    %322 = vmatprep.subr.mxu0 0.0
    %323 = vmatpush2.msra.mxu0 0.0
    %324 = vmatprep.subr.mxu0 0.0
    %325 = vmatpush2.msra.mxu0 0.0
    %326 = vmatprep.subr.mxu0 0.0
    %327 = vmatpush2.msra.mxu0 0.0
    %328 = vmatprep.subr.mxu0 0.0
    %329 = vmatpush2.msra.mxu0 0.0
    %330 = vmatprep.mubr.f32.mxu0 0.0
    %331 = vmatmul.mubr.f32.gmra.mxu0 %v242
    %v332 = vpop.f32.mrf.mxu0
    %v333 = vadd.f32 %v264, %v332
    %v334 = vpop.f32.mrf.mxu0
    %335 = vdwg.mxu0
    %v336 = vmax.f32 %v333, 0.0
    %v337 = vld [vmem:[#allocation7] sm:$0xff]
    %v338 = vld [vmem:[#allocation7 + $0x8] sm:$0xff]
    %v339 = vld [vmem:[#allocation7 + $0x10] sm:$0xff]
    %v340 = vld [vmem:[#allocation7 + $0x18] sm:$0xff]
    %v341 = vld [vmem:[#allocation7 + $0x20] sm:$0xff]
    %v342 = vld [vmem:[#allocation7 + $0x28] sm:$0xff]
    %v343 = vld [vmem:[#allocation7 + $0x30] sm:$0xff]
    %v344 = vld [vmem:[#allocation7 + $0x38] sm:$0xff]
    %v345 = vld [vmem:[#allocation7 + $0x40] sm:$0xff]
    %v346 = vld [vmem:[#allocation7 + $0x48] sm:$0xff]
    %v347 = vld [vmem:[#allocation7 + $0x50] sm:$0xff]
    %v348 = vld [vmem:[#allocation7 + $0x58] sm:$0xff]
    %v349 = vld [vmem:[#allocation7 + $0x60] sm:$0xff]
    %v350 = vld [vmem:[#allocation7 + $0x68] sm:$0xff]
    %v351 = vld [vmem:[#allocation7 + $0x70] sm:$0xff]
    %v352 = vld [vmem:[#allocation7 + $0x78] sm:$0xff]
    %v353 = vld [vmem:[%s8] sm:$0x1]
    %v355 = vlaneseq
    %v356 = vshrl.u32 %v355, 7
    %v357 = vsub.s32 0, %v356
    %v358 = vrot.slane %v353, %v357
    %360 = vmatprep.subr.mxu0 0.0
    %361 = vmatpush1.msra.mxu0 %v352
    %362 = vmatprep.subr.mxu0 0.0
    %363 = vmatpush1.msra.mxu0 %v351
    %364 = vmatprep.subr.mxu0 0.0
    %365 = vmatpush1.msra.mxu0 %v350
    %366 = vmatprep.subr.mxu0 0.0
    %367 = vmatpush1.msra.mxu0 %v349
    %368 = vmatprep.subr.mxu0 0.0
    %369 = vmatpush1.msra.mxu0 %v348
    %370 = vmatprep.subr.mxu0 0.0
    %371 = vmatpush1.msra.mxu0 %v347
    %372 = vmatprep.subr.mxu0 0.0
    %373 = vmatpush1.msra.mxu0 %v346
    %374 = vmatprep.subr.mxu0 0.0
    %375 = vmatpush1.msra.mxu0 %v345
    %376 = vmatprep.subr.mxu0 0.0
    %377 = vmatpush1.msra.mxu0 %v344
    %378 = vmatprep.subr.mxu0 0.0
    %379 = vmatpush1.msra.mxu0 %v343
    %380 = vmatprep.subr.mxu0 0.0
    %381 = vmatpush1.msra.mxu0 %v342
    %382 = vmatprep.subr.mxu0 0.0
    %383 = vmatpush1.msra.mxu0 %v341
    %384 = vmatprep.subr.mxu0 0.0
    %385 = vmatpush1.msra.mxu0 %v340
    %386 = vmatprep.subr.mxu0 0.0
    %387 = vmatpush1.msra.mxu0 %v339
    %388 = vmatprep.subr.mxu0 0.0
    %389 = vmatpush1.msra.mxu0 %v338
    %390 = vmatprep.subr.mxu0 0.0
    %391 = vmatpush1.msra.mxu0 %v337
    %392 = vmatprep.subr.mxu0 0.0
    %393 = vmatpush2.msra.mxu0 0.0
    %394 = vmatprep.subr.mxu0 0.0
    %395 = vmatpush2.msra.mxu0 0.0
    %396 = vmatprep.subr.mxu0 0.0
    %397 = vmatpush2.msra.mxu0 0.0
    %398 = vmatprep.subr.mxu0 0.0
    %399 = vmatpush2.msra.mxu0 0.0
    %400 = vmatprep.subr.mxu0 0.0
    %401 = vmatpush2.msra.mxu0 0.0
    %402 = vmatprep.subr.mxu0 0.0
    %403 = vmatpush2.msra.mxu0 0.0
    %404 = vmatprep.subr.mxu0 0.0
    %405 = vmatpush2.msra.mxu0 0.0
    %406 = vmatprep.subr.mxu0 0.0
    %407 = vmatpush2.msra.mxu0 0.0
    %408 = vmatprep.subr.mxu0 0.0
    %409 = vmatpush2.msra.mxu0 0.0
    %410 = vmatprep.subr.mxu0 0.0
    %411 = vmatpush2.msra.mxu0 0.0
    %412 = vmatprep.subr.mxu0 0.0
    %413 = vmatpush2.msra.mxu0 0.0
    %414 = vmatprep.subr.mxu0 0.0
    %415 = vmatpush2.msra.mxu0 0.0
    %416 = vmatprep.subr.mxu0 0.0
    %417 = vmatpush2.msra.mxu0 0.0
    %418 = vmatprep.subr.mxu0 0.0
    %419 = vmatpush2.msra.mxu0 0.0
    %420 = vmatprep.subr.mxu0 0.0
    %421 = vmatpush2.msra.mxu0 0.0
    %422 = vmatprep.subr.mxu0 0.0
    %423 = vmatpush2.msra.mxu0 0.0
    %424 = vmatprep.mubr.f32.mxu0 0.0
    %425 = vmatmul.mubr.f32.gmra.mxu0 %v336
    %v426 = vpop.f32.mrf.mxu0
    %v427 = vadd.f32 %v358, %v426
    %v428 = vpop.f32.mrf.mxu0
    %429 = vdwg.mxu0
    %v430 = vmax.f32 %v427, -20.0
    %v431 = vmin.f32 %v430, 2.0
    %v432 = vmul.f32 %v431, 1.442695
    %v433 = vpow.pop %v432
    %v434 = vld [vmem:[%s9] sm:$0x1]
    %v436 = vlaneseq
    %v437 = vshrl.u32 %v436, 7
    %v438 = vsub.s32 0, %v437
    %v439 = vrot.slane %v434, %v438
    %vm441 = vcmp.gt.f32.partialorder %v439, 0.5
    %v442 = vsel %vm441, %v433, %v427
    %443 = vst [vmem:[#allocation8] sm:$0xff] %v442
    // Predicated region
    $region54: #{tpu_custom_call.1} parent=1 // pred_check
      _
    $region55: #{tpu_custom_call.1} parent=1 // pred_check_branch
      %445 = sbr.rel (0) target = $region57
    $region56: #{tpu_custom_call.1} parent=1 // pred_region
      %s447 = ssub.s32 128, 128
      %448 = vsyncadd [#allocation4], %s447
      %s450 = sshll.u32 [#allocation8], 4
      %s451 = int_to_ptr.vmem [resolvable:$true] %s450
      %453 = dma.vmem_to_hbm [thread:$0]  %s451, 128, %s10, [#allocation4]
    $region57: #{tpu_custom_call.1} parent=1 // pred_fallthru
      _
    // Predicated region
    $region58: #{tpu_custom_call.1} parent=1 // pred_check
      _
    $region59: #{tpu_custom_call.1} parent=1 // pred_check_branch
      %455 = sbr.rel (0) target = $region61
    $region60: #{tpu_custom_call.1} parent=1 // pred_region
      %456 = dma.done [#allocation4], 128
    $region61: #{tpu_custom_call.1} parent=1 // pred_fallthru
      _
    %457 = vsyncpa [#allocation3], 1
    %458 = vsyncpa [#allocation6], 1
    %459 = vsyncpa [#allocation4], 1

</llo_original>
